<compile_context>
chip_gen: v7x
topology: tpu7x:2x2x1
jax: 0.10.0
libtpu: 0.0.40
codegen_flags: <defaults>
</compile_context>

<pallas_src>
import jax
import jax.numpy as jnp
from jax.experimental import pallas as pl
from jax.experimental.pallas import tpu as pltpu


def make_cutouts(x, facs, noise, *, cut_size, cutn):
    """x: (N, C, H, W) f32; facs: (cutn*N,) f32; noise: (cutn*N, C, P, P) f32."""
    N, C, H, W = x.shape
    P = cut_size
    assert H % P == 0 and W % P == 0, "example restricted to evenly divisible pools"
    kh, kw = H // P, W // P
    nw = kh * kw
    cpp = C * P * P  # lane-dense flattened (C, P, P); 4*8*8 = 256 = 2*128 here

    # --- wrapper glue (layout only, no compute) ---
    # Single relayout pass of the input: window index -> sublane axis,
    # flattened (c, p, q) -> lane axis.  xw[n, j*kw+l, c*P*P+p*P+q] = x[n,c,p*kh+j,q*kw+l]
    xw = (x.reshape(N, C, P, kh, P, kw)
            .transpose(0, 3, 5, 1, 2, 4)          # (N, kh, kw, C, P, P)
            .reshape(N, nw, cpp))
    # noise: (cutn*N, C, P, P) -> (N, cutn, cpp) so the batch sample is the grid axis.
    noise_r = noise.reshape(cutn, N, cpp).transpose(1, 0, 2)
    # facs_r[i, n] = facs[i*N + n]; lives in SMEM via scalar prefetch.
    facs_r = facs.reshape(cutn, N)

    def kernel(facs_ref, xw_ref, noise_ref, o_ref):
        # facs_ref : (cutn, N) f32 in SMEM (scalar prefetch)
        # xw_ref   : (nw, cpp)   one sample's pooling-window slab
        # noise_ref: (cutn, cpp) gaussian noise rows for this sample
        # o_ref    : (cutn, cpp) output rows for this sample
        n = pl.program_id(0)

        # Adaptive avg + max pool over the nw window positions.
        # nw is small & static -> unrolled VPU adds/maxes (no scratch, no XLU).
        row0 = xw_ref[0:1, :].astype(jnp.float32)
        acc = row0
        mx = row0
        for w in range(1, nw):
            row = xw_ref[w:w + 1, :].astype(jnp.float32)
            acc = acc + row
            mx = jnp.maximum(mx, row)
        pooled = (acc * (1.0 / nw) + mx) * 0.5                  # (1, cpp)

        # TODO(synk): Kornia random augmentations applied as identity.

        # repeat(cutn, 1, 1, 1) + per-sample noise, facs read as SMEM scalars.
        for i in range(cutn):
            fac = facs_ref[i, n]
            o_ref[i:i + 1, :] = (pooled + fac * noise_ref[i:i + 1, :]).astype(o_ref.dtype)

    out = pl.pallas_call(
        kernel,
        out_shape=jax.ShapeDtypeStruct((N, cutn, cpp), x.dtype),
        grid_spec=pltpu.PrefetchScalarGridSpec(
            num_scalar_prefetch=1,               # facs -> SMEM
            grid=(N,),                           # one step per batch sample
            in_specs=[
                pl.BlockSpec((None, nw, cpp), lambda n, facs: (n, 0, 0)),
                pl.BlockSpec((None, cutn, cpp), lambda n, facs: (n, 0, 0)),
            ],
            out_specs=pl.BlockSpec((None, cutn, cpp), lambda n, facs: (n, 0, 0)),
        ),
        compiler_params=pltpu.CompilerParams(
            # N is independent work -> shard across v7x's 2 TensorCores.
            dimension_semantics=("parallel",)),
    )(facs_r, xw, noise_r)

    # Restore torch's repeat(cutn,1,1,1) ordering: output row i*N + n = (cutout i, sample n).
    return out.transpose(1, 0, 2).reshape(cutn * N, C, P, P)


def _reference(x, facs, noise, *, cut_size, cutn):
    N, C, H, W = x.shape
    P = cut_size
    kh, kw = H // P, W // P
    x6 = x.reshape(N, C, P, kh, P, kw)
    pooled = (x6.mean(axis=(3, 5)) + x6.max(axis=(3, 5))) * 0.5       # (N, C, P, P)
    batch = jnp.tile(pooled, (cutn, 1, 1, 1))                          # repeat(cutn,1,1,1)
    return batch + facs[:, None, None, None] * noise


if __name__ == "__main__":
    # Module config: MakeCutouts(cut_size=8, cutn=4) -> pool_size = cut_size = 8
    N, C, H, W = 2, 4, 16, 16
    cut_size, cutn = 8, 4
    noise_fac = 0.1

    key = jax.random.PRNGKey(0)
    kx, kf, kn = jax.random.split(key, 3)
    x = jax.random.normal(kx, (N, C, H, W), dtype=jnp.float32)
    # batch.new_empty([cutn*N,1,1,1]).uniform_(0, noise_fac)
    facs = jax.random.uniform(kf, (cutn * N,), dtype=jnp.float32,
                              minval=0.0, maxval=noise_fac)
    # torch.randn_like(batch)
    noise = jax.random.normal(kn, (cutn * N, C, cut_size, cut_size), dtype=jnp.float32)

    out = make_cutouts(x, facs, noise, cut_size=cut_size, cutn=cutn)
    out = jax.block_until_ready(out)

    ref = _reference(x, facs, noise, cut_size=cut_size, cutn=cutn)
    assert out.shape == (cutn * N, C, cut_size, cut_size), out.shape
    assert jnp.allclose(out, ref, rtol=1e-5, atol=1e-5), \
        float(jnp.max(jnp.abs(out - ref)))

    print("KERNEL_OK")
</pallas_src>

<mosaic_0001>
module attributes {stable_mosaic.version = 11 : i64} {
  func.func @kernel(%arg0: i32, %arg1: memref<4x2xf32, #tpu.memory_space<smem>>, %arg2: memref<1x4x256xf32, #tpu.memory_space<vmem>>, %arg3: memref<1x4x256xf32, #tpu.memory_space<vmem>>, %arg4: memref<1x4x256xf32, #tpu.memory_space<vmem>>) attributes {dimension_semantics = [#tpu.dimension_semantics<parallel>], iteration_bounds = array<i64: 2>, scalar_prefetch = 1 : i64, scratch_operands = 0 : i64, tpu.core_type = #tpu.core_type<tc>, window_params = [{transform_indices = @transform_0, window_bounds = array<i64: 1, 4, 256>}, {transform_indices = @transform_1, window_bounds = array<i64: 1, 4, 256>}, {transform_indices = @transform_2, window_bounds = array<i64: 1, 4, 256>}]} {
    %c0 = arith.constant 0 : index
    %c0_0 = arith.constant 0 : index
    %c0_1 = arith.constant 0 : index
    %0 = vector.load %arg2[%c0, %c0_0, %c0_1] : memref<1x4x256xf32, #tpu.memory_space<vmem>>, vector<1x1x256xf32>
    %1 = vector.shape_cast %0 : vector<1x1x256xf32> to vector<1x256xf32>
    %c0_2 = arith.constant 0 : index
    %c1 = arith.constant 1 : index
    %c0_3 = arith.constant 0 : index
    %2 = vector.load %arg2[%c0_2, %c1, %c0_3] : memref<1x4x256xf32, #tpu.memory_space<vmem>>, vector<1x1x256xf32>
    %3 = vector.shape_cast %2 : vector<1x1x256xf32> to vector<1x256xf32>
    %4 = arith.addf %1, %3 : vector<1x256xf32>
    %5 = arith.maximumf %1, %3 : vector<1x256xf32>
    %c0_4 = arith.constant 0 : index
    %c2 = arith.constant 2 : index
    %c0_5 = arith.constant 0 : index
    %6 = vector.load %arg2[%c0_4, %c2, %c0_5] : memref<1x4x256xf32, #tpu.memory_space<vmem>>, vector<1x1x256xf32>
    %7 = vector.shape_cast %6 : vector<1x1x256xf32> to vector<1x256xf32>
    %8 = arith.addf %4, %7 : vector<1x256xf32>
    %9 = arith.maximumf %5, %7 : vector<1x256xf32>
    %c0_6 = arith.constant 0 : index
    %c3 = arith.constant 3 : index
    %c0_7 = arith.constant 0 : index
    %10 = vector.load %arg2[%c0_6, %c3, %c0_7] : memref<1x4x256xf32, #tpu.memory_space<vmem>>, vector<1x1x256xf32>
    %11 = vector.shape_cast %10 : vector<1x1x256xf32> to vector<1x256xf32>
    %12 = arith.addf %8, %11 : vector<1x256xf32>
    %13 = arith.maximumf %9, %11 : vector<1x256xf32>
    %cst = arith.constant 2.500000e-01 : f32
    %14 = vector.broadcast %cst : f32 to vector<1x256xf32>
    %15 = arith.mulf %12, %14 : vector<1x256xf32>
    %16 = arith.addf %15, %13 : vector<1x256xf32>
    %cst_8 = arith.constant 5.000000e-01 : f32
    %17 = vector.broadcast %cst_8 : f32 to vector<1x256xf32>
    %18 = arith.mulf %16, %17 : vector<1x256xf32>
    %c0_9 = arith.constant 0 : index
    %19 = arith.index_cast %arg0 : i32 to index
    %20 = memref.load %arg1[%c0_9, %19] : memref<4x2xf32, #tpu.memory_space<smem>>
    %c0_10 = arith.constant 0 : index
    %c0_11 = arith.constant 0 : index
    %c0_12 = arith.constant 0 : index
    %21 = vector.load %arg3[%c0_10, %c0_11, %c0_12] : memref<1x4x256xf32, #tpu.memory_space<vmem>>, vector<1x1x256xf32>
    %22 = vector.shape_cast %21 : vector<1x1x256xf32> to vector<1x256xf32>
    %23 = vector.broadcast %20 : f32 to vector<1x256xf32>
    %24 = arith.mulf %23, %22 : vector<1x256xf32>
    %25 = arith.addf %18, %24 : vector<1x256xf32>
    %c0_13 = arith.constant 0 : index
    %c0_14 = arith.constant 0 : index
    %c0_15 = arith.constant 0 : index
    %26 = vector.load %arg4[%c0_13, %c0_14, %c0_15] : memref<1x4x256xf32, #tpu.memory_space<vmem>>, vector<1x1x256xf32>
    %27 = vector.shape_cast %26 : vector<1x1x256xf32> to vector<1x256xf32>
    %28 = vector.shape_cast %25 : vector<1x256xf32> to vector<1x1x256xf32>
    tpu.vector_store %arg4[%c0_13, %c0_14, %c0_15], %28 {strides = array<i32>} : memref<1x4x256xf32, #tpu.memory_space<vmem>>, vector<1x1x256xf32>,
    %c1_16 = arith.constant 1 : index
    %29 = arith.index_cast %arg0 : i32 to index
    %30 = memref.load %arg1[%c1_16, %29] : memref<4x2xf32, #tpu.memory_space<smem>>
    %c0_17 = arith.constant 0 : index
    %c1_18 = arith.constant 1 : index
    %c0_19 = arith.constant 0 : index
    %31 = vector.load %arg3[%c0_17, %c1_18, %c0_19] : memref<1x4x256xf32, #tpu.memory_space<vmem>>, vector<1x1x256xf32>
    %32 = vector.shape_cast %31 : vector<1x1x256xf32> to vector<1x256xf32>
    %33 = vector.broadcast %30 : f32 to vector<1x256xf32>
    %34 = arith.mulf %33, %32 : vector<1x256xf32>
    %35 = arith.addf %18, %34 : vector<1x256xf32>
    %c0_20 = arith.constant 0 : index
    %c1_21 = arith.constant 1 : index
    %c0_22 = arith.constant 0 : index
    %36 = vector.load %arg4[%c0_20, %c1_21, %c0_22] : memref<1x4x256xf32, #tpu.memory_space<vmem>>, vector<1x1x256xf32>
    %37 = vector.shape_cast %36 : vector<1x1x256xf32> to vector<1x256xf32>
    %38 = vector.shape_cast %35 : vector<1x256xf32> to vector<1x1x256xf32>
    tpu.vector_store %arg4[%c0_20, %c1_21, %c0_22], %38 {strides = array<i32>} : memref<1x4x256xf32, #tpu.memory_space<vmem>>, vector<1x1x256xf32>,
    %c2_23 = arith.constant 2 : index
    %39 = arith.index_cast %arg0 : i32 to index
    %40 = memref.load %arg1[%c2_23, %39] : memref<4x2xf32, #tpu.memory_space<smem>>
    %c0_24 = arith.constant 0 : index
    %c2_25 = arith.constant 2 : index
    %c0_26 = arith.constant 0 : index
    %41 = vector.load %arg3[%c0_24, %c2_25, %c0_26] : memref<1x4x256xf32, #tpu.memory_space<vmem>>, vector<1x1x256xf32>
    %42 = vector.shape_cast %41 : vector<1x1x256xf32> to vector<1x256xf32>
    %43 = vector.broadcast %40 : f32 to vector<1x256xf32>
    %44 = arith.mulf %43, %42 : vector<1x256xf32>
    %45 = arith.addf %18, %44 : vector<1x256xf32>
    %c0_27 = arith.constant 0 : index
    %c2_28 = arith.constant 2 : index
    %c0_29 = arith.constant 0 : index
    %46 = vector.load %arg4[%c0_27, %c2_28, %c0_29] : memref<1x4x256xf32, #tpu.memory_space<vmem>>, vector<1x1x256xf32>
    %47 = vector.shape_cast %46 : vector<1x1x256xf32> to vector<1x256xf32>
    %48 = vector.shape_cast %45 : vector<1x256xf32> to vector<1x1x256xf32>
    tpu.vector_store %arg4[%c0_27, %c2_28, %c0_29], %48 {strides = array<i32>} : memref<1x4x256xf32, #tpu.memory_space<vmem>>, vector<1x1x256xf32>,
    %c3_30 = arith.constant 3 : index
    %49 = arith.index_cast %arg0 : i32 to index
    %50 = memref.load %arg1[%c3_30, %49] : memref<4x2xf32, #tpu.memory_space<smem>>
    %c0_31 = arith.constant 0 : index
    %c3_32 = arith.constant 3 : index
    %c0_33 = arith.constant 0 : index
    %51 = vector.load %arg3[%c0_31, %c3_32, %c0_33] : memref<1x4x256xf32, #tpu.memory_space<vmem>>, vector<1x1x256xf32>
    %52 = vector.shape_cast %51 : vector<1x1x256xf32> to vector<1x256xf32>
    %53 = vector.broadcast %50 : f32 to vector<1x256xf32>
    %54 = arith.mulf %53, %52 : vector<1x256xf32>
    %55 = arith.addf %18, %54 : vector<1x256xf32>
    %c0_34 = arith.constant 0 : index
    %c3_35 = arith.constant 3 : index
    %c0_36 = arith.constant 0 : index
    %56 = vector.load %arg4[%c0_34, %c3_35, %c0_36] : memref<1x4x256xf32, #tpu.memory_space<vmem>>, vector<1x1x256xf32>
    %57 = vector.shape_cast %56 : vector<1x1x256xf32> to vector<1x256xf32>
    %58 = vector.shape_cast %55 : vector<1x256xf32> to vector<1x1x256xf32>
    tpu.vector_store %arg4[%c0_34, %c3_35, %c0_36], %58 {strides = array<i32>} : memref<1x4x256xf32, #tpu.memory_space<vmem>>, vector<1x1x256xf32>,
    return
  }
  func.func @transform_0(%arg0: i32, %arg1: memref<4x2xf32, #tpu.memory_space<smem>>) -> (i32, i32, i32) {
    %c0_i32 = arith.constant 0 : i32
    %c0_i32_0 = arith.constant 0 : i32
    %c0_i32_1 = arith.constant 0 : i32
    return %arg0, %c0_i32, %c0_i32_0 : i32, i32, i32
  }
  func.func @transform_1(%arg0: i32, %arg1: memref<4x2xf32, #tpu.memory_space<smem>>) -> (i32, i32, i32) {
    %c0_i32 = arith.constant 0 : i32
    %c0_i32_0 = arith.constant 0 : i32
    %c0_i32_1 = arith.constant 0 : i32
    return %arg0, %c0_i32, %c0_i32_0 : i32, i32, i32
  }
  func.func @transform_2(%arg0: i32, %arg1: memref<4x2xf32, #tpu.memory_space<smem>>) -> (i32, i32, i32) {
    %c0_i32 = arith.constant 0 : i32
    %c0_i32_0 = arith.constant 0 : i32
    %c0_i32_1 = arith.constant 0 : i32
    return %arg0, %c0_i32, %c0_i32_0 : i32, i32, i32
  }
}

</mosaic_0001>

<llo_original>
// kernel: tpu_custom_call.1
$region0: #{tpu_custom_call.1}
  #allocation0 [shape = 'u32[]', space=smem, size = 0x4, offset = 0x4, fixed_abs, tag = 'smem constant byte address 0x4 - core index']
  #allocation1 [shape = 'u32[144,128]{1,0:T(1,128)}', space=vmem, size = 0x12000, scoped, tag = 'internal scratch']
  #allocation2 [shape = 's32[1]{0}', space=sflag, size = 0x4, scoped, tag = 'scoped memory for tpu_custom_call.1']
  #allocation3 [shape = 'u8[2048]{0}', space=smem, size = 0x800, scoped, tag = 'prefetched SMEM operand 0']
  %s0 = inlined_call_operand.vmem [shape: f32[4,2], index: 0, kind: input, shape index: {}]
  %s1 = inlined_call_operand.hbm [shape: f32[2,4,256], index: 1, kind: input, shape index: {}]
  %s2 = inlined_call_operand.hbm [shape: f32[2,4,256], index: 2, kind: input, shape index: {}]
  %s3 = inlined_call_operand.hbm [shape: f32[2,4,256], index: 3, kind: output, shape index: {}]
  %s4 = sld [smem:[#allocation0]]
  $region49: #{tpu_custom_call.1} parent=0
    _
  %s6 = ssub.s32 1, %s4
  %s7 = scalar_select 0, %s6, %s4
  %s8 = sshll.u32 %s0, 4
  %s9 = int_to_ptr.vmem [resolvable:$true] %s8
  %11 = dma.vmem_to_smem %s9, 64, [#allocation3], [#allocation2]
  %12 = dma.done [#allocation2], 64
  %13 = sfence
  $region1: #{tpu_custom_call.1} parent=0
    #allocation4 [shape = 'u8[8192]{0}', space=vmem, size = 0x2000, scoped, tag = 'input window, operand 1']
    #allocation5 [shape = 's32[2]{0}', space=sflag, size = 0x8, scoped, tag = 'scoped memory for tpu_custom_call.1']
    #allocation6 [shape = 's32[2]{0}', space=sflag, size = 0x8, scoped, tag = 'scoped memory for tpu_custom_call.1']
    #allocation7 [shape = 'u8[8192]{0}', space=vmem, size = 0x2000, scoped, tag = 'input window, operand 2']
    #allocation8 [shape = 's32[2]{0}', space=sflag, size = 0x8, scoped, tag = 'scoped memory for tpu_custom_call.1']
    #allocation9 [shape = 'u8[8192]{0}', space=vmem, size = 0x2000, scoped, tag = 'output window, operand 0']
    %14 = vsyncpa [#allocation5], 0
    %s15 = scalar_lea.sflag [#allocation5], 1
    %16 = vsyncpa %s15, 0
    %17 = vsyncpa [#allocation8], 0
    %s18 = scalar_lea.sflag [#allocation8], 1
    %19 = vsyncpa %s18, 0
    %20 = vsyncpa [#allocation6], 0
    %s21 = scalar_lea.sflag [#allocation6], 1
    %22 = vsyncpa %s21, 0
    loop: start=0, step=1, limit=4
    $region2: #{tpu_custom_call.1} parent=1 // loop_pre_header
      _
    $region3: #{tpu_custom_call.1} parent=1 // loop_header
      %s24 = sphi 0, %s28
      %p25 = scmp.ge.s32.totalorder %s24, 4
      %s34 = sphi 0, %s36
      %s37 = sphi 0, %s34
      %s38 = sphi 0, %s37
      %s54 = sphi 0, %s38
      %s60 = sphi 0, %s62
      %s63 = sphi 0, %s60
      %s64 = sphi 0, %s63
      %s80 = sphi 0, %s64
      %s86 = sphi 0, %s88
      %s89 = sphi 0, %s86
      %s90 = sphi 0, %s89
      %s106 = sphi 0, %s90
    $region4: #{tpu_custom_call.1} parent=1 // loop_header_branch
      %27 = sbr.rel (%p25) target = $region8
    $region5: #{tpu_custom_call.1} parent=1 // loop_body
      %s29 = ssub.s32 %s24, 1
      %s30 = ssub.s32 %s24, 2
      %s31 = sadd.s32 %s24, 1
      %s32 = ssub.s32 %s24, %s31
      %p33 = scmp.eq.s32.totalorder %s32, 0
      %s35 = sadd.s32 %s34, 1
      %s36 = scalar_select %p33, %s34, %s35
      %p39 = pneg %p33
      %p40 = scmp.eq.s32.totalorder %s24, 1
      %p41 = por %p39, %p40
      %p42 = scmp.ne.s32.totalorder %s34, %s37
      %p43 = scmp.eq.s32.totalorder %s24, 0
      %p44 = por %p42, %p43
      %p45 = scmp.ne.s32.totalorder %s34, %s37
      %p46 = scmp.eq.s32.totalorder %s29, 1
      %p47 = por %p45, %p46
      %p48 = scmp.ne.s32.totalorder %s37, %s38
      %p49 = scmp.eq.s32.totalorder %s29, 0
      %p50 = por %p48, %p49
      %p51 = scmp.ne.s32.totalorder %s37, %s38
      %p52 = scmp.eq.s32.totalorder %s30, 1
      %p53 = por %p51, %p52
      %p55 = scmp.ne.s32.totalorder %s38, %s54
      %p56 = scmp.eq.s32.totalorder %s30, 0
      %p57 = por %p55, %p56
      %s58 = ssub.s32 %s24, %s31
      %p59 = scmp.eq.s32.totalorder %s58, 0
      %s61 = sadd.s32 %s60, 1
      %s62 = scalar_select %p59, %s60, %s61
      %p65 = pneg %p59
      %p66 = scmp.eq.s32.totalorder %s24, 1
      %p67 = por %p65, %p66
      %p68 = scmp.ne.s32.totalorder %s60, %s63
      %p69 = scmp.eq.s32.totalorder %s24, 0
      %p70 = por %p68, %p69
      %p71 = scmp.ne.s32.totalorder %s60, %s63
      %p72 = scmp.eq.s32.totalorder %s29, 1
      %p73 = por %p71, %p72
      %p74 = scmp.ne.s32.totalorder %s63, %s64
      %p75 = scmp.eq.s32.totalorder %s29, 0
      %p76 = por %p74, %p75
      %p77 = scmp.ne.s32.totalorder %s63, %s64
      %p78 = scmp.eq.s32.totalorder %s30, 1
      %p79 = por %p77, %p78
      %p81 = scmp.ne.s32.totalorder %s64, %s80
      %p82 = scmp.eq.s32.totalorder %s30, 0
      %p83 = por %p81, %p82
      %s84 = ssub.s32 %s24, %s31
      %p85 = scmp.eq.s32.totalorder %s84, 0
      %s87 = sadd.s32 %s86, 1
      %s88 = scalar_select %p85, %s86, %s87
      %p91 = pneg %p85
      %p92 = scmp.eq.s32.totalorder %s24, 1
      %p93 = por %p91, %p92
      %p94 = scmp.ne.s32.totalorder %s86, %s89
      %p95 = scmp.eq.s32.totalorder %s24, 0
      %p96 = por %p94, %p95
      %p97 = scmp.ne.s32.totalorder %s86, %s89
      %p98 = scmp.eq.s32.totalorder %s29, 1
      %p99 = por %p97, %p98
      %p100 = scmp.ne.s32.totalorder %s89, %s90
      %p101 = scmp.eq.s32.totalorder %s29, 0
      %p102 = por %p100, %p101
      %p103 = scmp.ne.s32.totalorder %s89, %s90
      %p104 = scmp.eq.s32.totalorder %s30, 1
      %p105 = por %p103, %p104
      %p107 = scmp.ne.s32.totalorder %s90, %s106
      %p108 = scmp.eq.s32.totalorder %s30, 0
      %p109 = por %p107, %p108
      %p110 = scmp.le.s32.totalorder 1, %s24
      %p111 = scmp.lt.s32.totalorder %s24, 3
      %p112 = pnand %p110, %p111
      %p113 = pneg %p112
      // Predicated region
      $region9: #{tpu_custom_call.1} parent=5 // pred_check
        _
      $region10: #{tpu_custom_call.1} parent=5 // pred_check_branch
        %115 = sbr.rel (%p112) target = $region12
      $region11: #{tpu_custom_call.1} parent=5 // pred_region
        %s116 = ssub.s32 %s24, 1
      $region12: #{tpu_custom_call.1} parent=5 // pred_fallthru
        _
      %p117 = scmp.lt.s32.totalorder %s24, 2
      // Predicated region
      $region13: #{tpu_custom_call.1} parent=5 // pred_check
        %p118 = pneg %p117
      $region14: #{tpu_custom_call.1} parent=5 // pred_check_branch
        %120 = sbr.rel (%p118) target = $region16
      $region15: #{tpu_custom_call.1} parent=5 // pred_region
        // Predicated region
        $region17: #{tpu_custom_call.1} parent=15 // pred_check
          %p121 = pneg %p44
        $region18: #{tpu_custom_call.1} parent=15 // pred_check_branch
          %123 = sbr.rel (%p121) target = $region20
        $region19: #{tpu_custom_call.1} parent=15 // pred_region
          %s124 = sand.u32 %s34, 1
          %s125 = scalar_lea.sflag [#allocation5], %s124
          %s126 = sand.u32 %s34, 1
          %s127 = smul.addr %s126, 8
          %s128 = scalar_lea.vmem [#allocation4], %s127
          %s130 = ssub.s32 128, 128
          %131 = vsyncadd %s125, %s130
          %s132 = smul.addr %s24, 2
          %s133 = smul.addr %s132, 64
          %s134 = scalar_lea.hbm %s1, %s133
          %s136 = sshll.u32 %s128, 4
          %s137 = int_to_ptr.vmem [resolvable:$true] %s136
          %139 = dma.hbm_to_vmem [thread:$0]  %s134, 128, %s137, %s125
        $region20: #{tpu_custom_call.1} parent=15 // pred_fallthru
          _
        // Predicated region
        $region21: #{tpu_custom_call.1} parent=15 // pred_check
          %p140 = pneg %p70
        $region22: #{tpu_custom_call.1} parent=15 // pred_check_branch
          %142 = sbr.rel (%p140) target = $region24
        $region23: #{tpu_custom_call.1} parent=15 // pred_region
          %s143 = sand.u32 %s60, 1
          %s144 = scalar_lea.sflag [#allocation8], %s143
          %s145 = sand.u32 %s60, 1
          %s146 = smul.addr %s145, 8
          %s147 = scalar_lea.vmem [#allocation7], %s146
          %s149 = ssub.s32 128, 128
          %150 = vsyncadd %s144, %s149
          %s151 = smul.addr %s24, 2
          %s152 = smul.addr %s151, 64
          %s153 = scalar_lea.hbm %s2, %s152
          %s155 = sshll.u32 %s147, 4
          %s156 = int_to_ptr.vmem [resolvable:$true] %s155
          %158 = dma.hbm_to_vmem [thread:$0]  %s153, 128, %s156, %s144
        $region24: #{tpu_custom_call.1} parent=15 // pred_fallthru
          _
      $region16: #{tpu_custom_call.1} parent=5 // pred_fallthru
        _
      %p159 = scmp.le.s32.totalorder 1, %s24
      %p160 = scmp.lt.s32.totalorder %s24, 3
      %p161 = pnand %p159, %p160
      %p162 = pneg %p161
      // Predicated region
      $region25: #{tpu_custom_call.1} parent=5 // pred_check
        _
      $region26: #{tpu_custom_call.1} parent=5 // pred_check_branch
        %164 = sbr.rel (%p161) target = $region28
      $region27: #{tpu_custom_call.1} parent=5 // pred_region
        %s165 = ssub.s32 %s24, 1
        %s166 = sand.u32 %s37, 1
        %s167 = scalar_lea.sflag [#allocation5], %s166
        %s168 = sand.u32 %s37, 1
        %s169 = smul.addr %s168, 8
        %s170 = scalar_lea.vmem [#allocation4], %s169
        // Predicated region
        $region29: #{tpu_custom_call.1} parent=27 // pred_check
          %p171 = pneg %p50
        $region30: #{tpu_custom_call.1} parent=27 // pred_check_branch
          %173 = sbr.rel (%p171) target = $region32
        $region31: #{tpu_custom_call.1} parent=27 // pred_region
          %174 = dma.done %s167, 128
        $region32: #{tpu_custom_call.1} parent=27 // pred_fallthru
          _
        %s175 = sand.u32 %s63, 1
        %s176 = scalar_lea.sflag [#allocation8], %s175
        %s177 = sand.u32 %s63, 1
        %s178 = smul.addr %s177, 8
        %s179 = scalar_lea.vmem [#allocation7], %s178
        // Predicated region
        $region33: #{tpu_custom_call.1} parent=27 // pred_check
          %p180 = pneg %p76
        $region34: #{tpu_custom_call.1} parent=27 // pred_check_branch
          %182 = sbr.rel (%p180) target = $region36
        $region35: #{tpu_custom_call.1} parent=27 // pred_region
          %183 = dma.done %s176, 128
        $region36: #{tpu_custom_call.1} parent=27 // pred_fallthru
          _
        %s184 = sand.u32 %s37, 1
        %s185 = scalar_lea.sflag [#allocation5], %s184
        %s186 = sand.u32 %s37, 1
        %s187 = smul.addr %s186, 8
        %s188 = scalar_lea.vmem [#allocation4], %s187
        %p189 = pneg %p50
        %p190 = pneg %p47
        %s191 = sand.u32 %s63, 1
        %s192 = scalar_lea.sflag [#allocation8], %s191
        %s193 = sand.u32 %s63, 1
        %s194 = smul.addr %s193, 8
        %s195 = scalar_lea.vmem [#allocation7], %s194
        %p196 = pneg %p76
        %p197 = pneg %p73
        %p198 = pneg %p102
        %p199 = pneg %p99
        %s200 = sand.u32 %s89, 1
        %s201 = scalar_lea.sflag [#allocation6], %s200
        %s202 = sand.u32 %s89, 1
        %s203 = smul.addr %s202, 8
        %s204 = scalar_lea.vmem [#allocation9], %s203
        %v205 = vld [vmem:[%s170] ss:$4 sm:$0x3]
        %s206 = scalar_lea.vmem %s170, 1 [#allocation4]
        %v207 = vld [vmem:[%s206] ss:$4 sm:$0x3]
        %v208 = vadd.f32 %v205, %v207
        %v209 = vmax.f32 %v205, %v207
        %s210 = scalar_lea.vmem %s170, 2 [#allocation4]
        %v211 = vld [vmem:[%s210] ss:$4 sm:$0x3]
        %v212 = vadd.f32 %v208, %v211
        %v213 = vmax.f32 %v209, %v211
        %s214 = scalar_lea.vmem %s170, 3 [#allocation4]
        %v215 = vld [vmem:[%s214] ss:$4 sm:$0x3]
        %v216 = vadd.f32 %v212, %v215
        %v217 = vmax.f32 %v213, %v215
        %v218 = vmul.f32 %v216, 0.25
        %v219 = vadd.f32 %v218, %v217
        %v220 = vmul.f32 %v219, 0.5
        %s221 = sld [smem:[#allocation3 + %s29]]
        %v222 = vld [vmem:[%s179] ss:$4 sm:$0x3]
        %v223 = vstv %s221
        %v224 = vmul.f32 %v223, %v222
        %v225 = vadd.f32 %v220, %v224
        %v226 = vlaneseq
        %vm227 = vcmp.ge.s32.totalorder %v226, 0
        %vm228 = vcmp.lt.s32.totalorder %v226, 256
        %vm229 = vmand %vm227, %vm228
        %230 = vst.msk [vmem:[%s204] ss:$4 sm:$0x3] %vm229, %v225
        %s231 = sshra.s32 %s29, 7
        %s232 = sand.u32 %s29, 127
        %s233 = sadd.s32 %s231, 1
        %s234 = smul.u32 %s233, 128
        %s235 = sshra.s32 %s29, 7
        %s236 = sand.u32 %s29, 127
        %s237 = sadd.s32 %s234, %s236
        %s238 = sld [smem:[#allocation3 + %s237]]
        %s239 = scalar_lea.vmem %s179, 1 [#allocation7]
        %v240 = vld [vmem:[%s239] ss:$4 sm:$0x3]
        %v241 = vstv %s238
        %v242 = vmul.f32 %v241, %v240
        %v243 = vadd.f32 %v220, %v242
        %s244 = scalar_lea.vmem %s204, 1 [#allocation9]
        %245 = vst.msk [vmem:[%s244] ss:$4 sm:$0x3] %vm229, %v243
        %s246 = sadd.s32 %s231, 2
        %s247 = smul.u32 %s246, 128
        %s248 = sadd.s32 %s247, %s236
        %s249 = sld [smem:[#allocation3 + %s248]]
        %s250 = scalar_lea.vmem %s179, 2 [#allocation7]
        %v251 = vld [vmem:[%s250] ss:$4 sm:$0x3]
        %v252 = vstv %s249
        %v253 = vmul.f32 %v252, %v251
        %v254 = vadd.f32 %v220, %v253
        %s255 = scalar_lea.vmem %s204, 2 [#allocation9]
        %256 = vst.msk [vmem:[%s255] ss:$4 sm:$0x3] %vm229, %v254
        %s257 = sadd.s32 %s231, 3
        %s258 = smul.u32 %s257, 128
        %s259 = sadd.s32 %s258, %s236
        %s260 = sld [smem:[#allocation3 + %s259]]
        %s261 = scalar_lea.vmem %s179, 3 [#allocation7]
        %v262 = vld [vmem:[%s261] ss:$4 sm:$0x3]
        %v263 = vstv %s260
        %v264 = vmul.f32 %v263, %v262
        %v265 = vadd.f32 %v220, %v264
        %s266 = scalar_lea.vmem %s204, 3 [#allocation9]
        %267 = vst.msk [vmem:[%s266] ss:$4 sm:$0x3] %vm229, %v265
        %s268 = sand.u32 %s89, 1
        %s269 = scalar_lea.sflag [#allocation6], %s268
        %s270 = sand.u32 %s89, 1
        %s271 = smul.addr %s270, 8
        %s272 = scalar_lea.vmem [#allocation9], %s271
        // Predicated region
        $region37: #{tpu_custom_call.1} parent=27 // pred_check
          %p273 = pneg %p99
        $region38: #{tpu_custom_call.1} parent=27 // pred_check_branch
          %275 = sbr.rel (%p273) target = $region40
        $region39: #{tpu_custom_call.1} parent=27 // pred_region
          %s277 = ssub.s32 128, 128
          %278 = vsyncadd %s269, %s277
          %s279 = smul.addr %s29, 2
          %s280 = smul.addr %s279, 64
          %s281 = scalar_lea.hbm %s3, %s280
          %s283 = sshll.u32 %s272, 4
          %s284 = int_to_ptr.vmem [resolvable:$true] %s283
          %286 = dma.vmem_to_hbm [thread:$0]  %s284, 128, %s281, %s269
        $region40: #{tpu_custom_call.1} parent=27 // pred_fallthru
          _
      $region28: #{tpu_custom_call.1} parent=5 // pred_fallthru
        _
      %p287 = scmp.le.s32.totalorder 2, %s24
      // Predicated region
      $region41: #{tpu_custom_call.1} parent=5 // pred_check
        %p288 = pneg %p287
      $region42: #{tpu_custom_call.1} parent=5 // pred_check_branch
        %290 = sbr.rel (%p288) target = $region44
      $region43: #{tpu_custom_call.1} parent=5 // pred_region
        %s291 = ssub.s32 %s24, 2
        // Predicated region
        $region45: #{tpu_custom_call.1} parent=43 // pred_check
          %p292 = pneg %p105
        $region46: #{tpu_custom_call.1} parent=43 // pred_check_branch
          %294 = sbr.rel (%p292) target = $region48
        $region47: #{tpu_custom_call.1} parent=43 // pred_region
          %s295 = sand.u32 %s90, 1
          %s296 = scalar_lea.sflag [#allocation6], %s295
          %s297 = sand.u32 %s90, 1
          %s298 = smul.addr %s297, 8
          %s299 = scalar_lea.vmem [#allocation9], %s298
          %300 = dma.done %s296, 128
        $region48: #{tpu_custom_call.1} parent=43 // pred_fallthru
          _
      $region44: #{tpu_custom_call.1} parent=5 // pred_fallthru
        _
    $region6: #{tpu_custom_call.1} parent=1 // loop_footer
      %s28 = sadd.s32 1, %s24
    $region7: #{tpu_custom_call.1} parent=1 // loop_footer_branch
      %23 = sbr.rel target = $region3
    $region8: #{tpu_custom_call.1} parent=1 // loop_exit
      _
    %301 = vsyncpa [#allocation5], 1
    %s302 = scalar_lea.sflag [#allocation5], 1
    %303 = vsyncpa %s302, 1
    %304 = vsyncpa [#allocation8], 1
    %s305 = scalar_lea.sflag [#allocation8], 1
    %306 = vsyncpa %s305, 1
    %307 = vsyncpa [#allocation6], 1
    %s308 = scalar_lea.sflag [#allocation6], 1
    %309 = vsyncpa %s308, 1

</llo_original>
